<compile_context>
chip_gen: v6e
topology: v6e:2x2x1
jax: 0.10.0
libtpu: 0.0.40
codegen_flags: <defaults>
</compile_context>

<pallas_src>
import functools

import jax
import jax.numpy as jnp
from jax.experimental import pallas as pl
from jax.experimental.pallas import tpu as pltpu


def _round_up(x: int, m: int) -> int:
    return ((x + m - 1) // m) * m


def _packed_layout(n_state: int, n_hidden: int, n_action: int):
    """8-row-aligned offsets of each section inside the packed (rows, n_hidden) buffer."""
    w1_r0 = 0                                          # fc1 weight rows [0, n_state)
    b1_row = _round_up(n_state, 8)                     # fc1 bias row (8-aligned)
    w2_r0 = b1_row + 8                                 # fc2 weight block (8-aligned)
    b2_row = w2_r0 + n_hidden                          # fc2 bias row (8-aligned)
    bh_row = b2_row + 8                                # fused-head bias row (8-aligned)
    wh_r0 = bh_row + 8                                 # fused-head weight block (8-aligned)
    total_rows = wh_r0 + n_hidden
    return w1_r0, b1_row, w2_r0, b2_row, bh_row, wh_r0, total_rows


def dueling_dqn_kernel(x_ref, p_ref, out_ref, *, n_state, n_hidden, n_action):
    (w1_r0, b1_row, w2_r0, b2_row, bh_row, wh_r0, _) = _packed_layout(
        n_state, n_hidden, n_action)

    x = x_ref[...]                                               # (B, n_state)

    # ---- fc1 + ReLU on the VPU: K is tiny, unroll as broadcast FMAs ----
    w1_blk = p_ref[w1_r0:w1_r0 + 8, :]                           # one aligned (8, H) load
    h1 = p_ref[b1_row:b1_row + 1, :]                             # (1, H) bias
    for k in range(n_state):                                     # static unroll (K=4)
        h1 = h1 + x[:, k:k + 1] * w1_blk[k:k + 1, :]             # (B,1)*(1,H) FMA
    h1 = jnp.maximum(h1, 0.0)                                    # (B, H)

    # ---- fc2 + ReLU (MXU, K = H = 128) ----
    w2 = p_ref[w2_r0:w2_r0 + n_hidden, :]                        # (H, H)
    h2 = jnp.dot(h1, w2, preferred_element_type=jnp.float32)
    h2 = jnp.maximum(h2 + p_ref[b2_row:b2_row + 1, :], 0.0)      # (B, H)

    # ---- fused advantage|value head: one matmul, split columns ----
    wh = p_ref[wh_r0:wh_r0 + n_hidden, :]                        # (H, 128) padded
    heads = jnp.dot(h2, wh, preferred_element_type=jnp.float32)
    heads = heads + p_ref[bh_row:bh_row + 1, :]                  # (B, 128)

    adv = heads[:, :n_action]                                    # (B, A)
    val = heads[:, n_action:n_action + 1]                        # (B, 1)

    # Global mean over ALL advantage elements (torch .mean() with no dim).
    adv_mean = jnp.mean(adv)
    out_ref[...] = val + adv - adv_mean                          # (B, A)


def pack_params(params, n_state, n_hidden, n_action):
    """Pack (w1,b1,w2,b2,wa,ba,wv,bv) into a single (rows, n_hidden) f32 buffer."""
    (w1, b1, w2, b2, wa, ba, wv, bv) = params
    assert n_hidden % 128 == 0 and n_action + 1 <= n_hidden
    (w1_r0, b1_row, w2_r0, b2_row, bh_row, wh_r0, total_rows) = _packed_layout(
        n_state, n_hidden, n_action)

    P = jnp.zeros((total_rows, n_hidden), jnp.float32)
    P = P.at[w1_r0:w1_r0 + n_state, :].set(w1)                   # fc1 weight
    P = P.at[b1_row:b1_row + 1, :].set(b1)                       # fc1 bias
    P = P.at[w2_r0:w2_r0 + n_hidden, :].set(w2)                  # fc2 weight
    P = P.at[b2_row:b2_row + 1, :].set(b2)                       # fc2 bias
    # fused head: cols [0:A) = advantage, col A = value, rest stay zero
    P = P.at[bh_row, 0:n_action].set(ba[0])
    P = P.at[bh_row, n_action].set(bv[0, 0])
    P = P.at[wh_r0:wh_r0 + n_hidden, 0:n_action].set(wa)
    P = P.at[wh_r0:wh_r0 + n_hidden, n_action].set(wv[:, 0])
    return P


def dueling_dqn_forward(x, packed_params, *, n_state, n_hidden, n_action):
    B = x.shape[0]
    kernel = functools.partial(dueling_dqn_kernel, n_state=n_state,
                               n_hidden=n_hidden, n_action=n_action)
    vmem = pl.BlockSpec(memory_space=pltpu.MemorySpace.VMEM)
    return pl.pallas_call(
        kernel,
        out_shape=jax.ShapeDtypeStruct((B, n_action), jnp.float32),
        in_specs=[vmem, vmem],
        out_specs=vmem,
    )(x, packed_params)


def init_params(key, n_state=4, n_action=2, n_hidden=128):
    """Deterministic PyTorch-style init. Weights stored (in, out), biases (1, out)."""
    def linear(key, fan_in, fan_out):
        kw, kb = jax.random.split(key)
        bound = 1.0 / jnp.sqrt(float(fan_in))
        w = jax.random.uniform(kw, (fan_in, fan_out), jnp.float32, -bound, bound)
        b = jax.random.uniform(kb, (1, fan_out), jnp.float32, -bound, bound)
        return w, b

    k1, k2, k3, k4 = jax.random.split(key, 4)
    w1, b1 = linear(k1, n_state, n_hidden)
    w2, b2 = linear(k2, n_hidden, n_hidden)
    wa, ba = linear(k3, n_hidden, n_action)
    wv, bv = linear(k4, n_hidden, 1)
    return (w1, b1, w2, b2, wa, ba, wv, bv)


def reference_forward(x, params):
    """Pure-JAX reference matching the PyTorch module semantics."""
    (w1, b1, w2, b2, wa, ba, wv, bv) = params
    h1 = jnp.maximum(x @ w1 + b1, 0.0)
    h2 = jnp.maximum(h1 @ w2 + b2, 0.0)
    adv = h2 @ wa + ba
    val = h2 @ wv + bv
    return val + adv - adv.mean()


if __name__ == "__main__":
    n_state, n_action, n_hidden, batch = 4, 2, 128, 8

    key = jax.random.PRNGKey(0)
    kx, kp = jax.random.split(key)
    x = jax.random.normal(kx, (batch, n_state), dtype=jnp.float32)
    params = init_params(kp, n_state, n_action, n_hidden)
    packed = pack_params(params, n_state, n_hidden, n_action)

    out = dueling_dqn_forward(x, packed, n_state=n_state,
                              n_hidden=n_hidden, n_action=n_action)
    out = jax.block_until_ready(out)

    ref = reference_forward(x, params)
    assert out.shape == (batch, n_action)
    assert jnp.allclose(out, ref, atol=1e-4, rtol=1e-4), "mismatch vs reference"

    print("KERNEL_OK")
</pallas_src>

<mosaic_0001>
module attributes {stable_mosaic.version = 11 : i64} {
  func.func @dueling_dqn_kernel(%arg0: memref<8x4xf32, #tpu.memory_space<vmem>>, %arg1: memref<288x128xf32, #tpu.memory_space<vmem>>, %arg2: memref<8x2xf32, #tpu.memory_space<vmem>>) attributes {dimension_semantics = [], scalar_prefetch = 0 : i64, scratch_operands = 0 : i64, tpu.core_type = #tpu.core_type<tc>} {
    %c0 = arith.constant 0 : index
    %c0_0 = arith.constant 0 : index
    %0 = vector.load %arg0[%c0, %c0_0] : memref<8x4xf32, #tpu.memory_space<vmem>>, vector<8x4xf32>
    %c0_1 = arith.constant 0 : index
    %c0_2 = arith.constant 0 : index
    %1 = vector.load %arg1[%c0_1, %c0_2] : memref<288x128xf32, #tpu.memory_space<vmem>>, vector<8x128xf32>
    %c8 = arith.constant 8 : index
    %c0_3 = arith.constant 0 : index
    %2 = vector.load %arg1[%c8, %c0_3] : memref<288x128xf32, #tpu.memory_space<vmem>>, vector<1x128xf32>
    %3 = vector.extract_strided_slice %0 {offsets = [0, 0], sizes = [8, 1], strides = [1, 1]} : vector<8x4xf32> to vector<8x1xf32>
    %4 = vector.extract_strided_slice %1 {offsets = [0, 0], sizes = [1, 128], strides = [1, 1]} : vector<8x128xf32> to vector<1x128xf32>
    %5 = vector.broadcast %3 : vector<8x1xf32> to vector<8x128xf32>
    %6 = vector.broadcast %4 : vector<1x128xf32> to vector<8x128xf32>
    %7 = arith.mulf %5, %6 : vector<8x128xf32>
    %8 = vector.broadcast %2 : vector<1x128xf32> to vector<8x128xf32>
    %9 = arith.addf %8, %7 : vector<8x128xf32>
    %10 = vector.extract_strided_slice %0 {offsets = [0, 1], sizes = [8, 1], strides = [1, 1]} : vector<8x4xf32> to vector<8x1xf32>
    %11 = vector.extract_strided_slice %1 {offsets = [1, 0], sizes = [1, 128], strides = [1, 1]} : vector<8x128xf32> to vector<1x128xf32>
    %12 = vector.broadcast %10 : vector<8x1xf32> to vector<8x128xf32>
    %13 = vector.broadcast %11 : vector<1x128xf32> to vector<8x128xf32>
    %14 = arith.mulf %12, %13 : vector<8x128xf32>
    %15 = arith.addf %9, %14 : vector<8x128xf32>
    %16 = vector.extract_strided_slice %0 {offsets = [0, 2], sizes = [8, 1], strides = [1, 1]} : vector<8x4xf32> to vector<8x1xf32>
    %17 = vector.extract_strided_slice %1 {offsets = [2, 0], sizes = [1, 128], strides = [1, 1]} : vector<8x128xf32> to vector<1x128xf32>
    %18 = vector.broadcast %16 : vector<8x1xf32> to vector<8x128xf32>
    %19 = vector.broadcast %17 : vector<1x128xf32> to vector<8x128xf32>
    %20 = arith.mulf %18, %19 : vector<8x128xf32>
    %21 = arith.addf %15, %20 : vector<8x128xf32>
    %22 = vector.extract_strided_slice %0 {offsets = [0, 3], sizes = [8, 1], strides = [1, 1]} : vector<8x4xf32> to vector<8x1xf32>
    %23 = vector.extract_strided_slice %1 {offsets = [3, 0], sizes = [1, 128], strides = [1, 1]} : vector<8x128xf32> to vector<1x128xf32>
    %24 = vector.broadcast %22 : vector<8x1xf32> to vector<8x128xf32>
    %25 = vector.broadcast %23 : vector<1x128xf32> to vector<8x128xf32>
    %26 = arith.mulf %24, %25 : vector<8x128xf32>
    %27 = arith.addf %21, %26 : vector<8x128xf32>
    %cst = arith.constant 0.000000e+00 : f32
    %28 = vector.broadcast %cst : f32 to vector<8x128xf32>
    %29 = arith.maximumf %27, %28 : vector<8x128xf32>
    %c16 = arith.constant 16 : index
    %c0_4 = arith.constant 0 : index
    %30 = vector.load %arg1[%c16, %c0_4] : memref<288x128xf32, #tpu.memory_space<vmem>>, vector<128x128xf32>
    %cst_5 = arith.constant dense<0.000000e+00> : vector<8x128xf32>
    %31 = tpu.matmul %29, %30, %cst_5 {dimension_numbers = #tpu.dot_dimension_numbers<[1], [0], [0], [1], [0, 0, 1, 1], [], []>} : vector<8x128xf32>, vector<128x128xf32>, vector<8x128xf32> -> vector<8x128xf32>
    %c144 = arith.constant 144 : index
    %c0_6 = arith.constant 0 : index
    %32 = vector.load %arg1[%c144, %c0_6] : memref<288x128xf32, #tpu.memory_space<vmem>>, vector<1x128xf32>
    %33 = vector.broadcast %32 : vector<1x128xf32> to vector<8x128xf32>
    %34 = arith.addf %31, %33 : vector<8x128xf32>
    %cst_7 = arith.constant 0.000000e+00 : f32
    %35 = vector.broadcast %cst_7 : f32 to vector<8x128xf32>
    %36 = arith.maximumf %34, %35 : vector<8x128xf32>
    %c160 = arith.constant 160 : index
    %c0_8 = arith.constant 0 : index
    %37 = vector.load %arg1[%c160, %c0_8] : memref<288x128xf32, #tpu.memory_space<vmem>>, vector<128x128xf32>
    %cst_9 = arith.constant dense<0.000000e+00> : vector<8x128xf32>
    %38 = tpu.matmul %36, %37, %cst_9 {dimension_numbers = #tpu.dot_dimension_numbers<[1], [0], [0], [1], [0, 0, 1, 1], [], []>} : vector<8x128xf32>, vector<128x128xf32>, vector<8x128xf32> -> vector<8x128xf32>
    %c152 = arith.constant 152 : index
    %c0_10 = arith.constant 0 : index
    %39 = vector.load %arg1[%c152, %c0_10] : memref<288x128xf32, #tpu.memory_space<vmem>>, vector<1x128xf32>
    %40 = vector.broadcast %39 : vector<1x128xf32> to vector<8x128xf32>
    %41 = arith.addf %38, %40 : vector<8x128xf32>
    %42 = vector.extract_strided_slice %41 {offsets = [0, 0], sizes = [8, 2], strides = [1, 1]} : vector<8x128xf32> to vector<8x2xf32>
    %43 = vector.extract_strided_slice %41 {offsets = [0, 2], sizes = [8, 1], strides = [1, 1]} : vector<8x128xf32> to vector<8x1xf32>
    %44 = vector.shape_cast %42 : vector<8x2xf32> to vector<1x8x2xf32>
    %cst_11 = arith.constant dense<0.000000e+00> : vector<1xf32>
    %45 = vector.multi_reduction <add>, %44, %cst_11 [1, 2] : vector<1x8x2xf32> to vector<1xf32>
    %46 = vector.shape_cast %45 : vector<1xf32> to vector<1x1x1xf32>
    %47 = vector.extract %46[0, 0, 0] : f32 from vector<1x1x1xf32>
    %cst_12 = arith.constant 1.600000e+01 : f32
    %48 = arith.divf %47, %cst_12 : f32
    %49 = vector.broadcast %43 : vector<8x1xf32> to vector<8x2xf32>
    %50 = arith.addf %49, %42 : vector<8x2xf32>
    %51 = vector.broadcast %48 : f32 to vector<8x2xf32>
    %52 = arith.subf %50, %51 : vector<8x2xf32>
    %c0_13 = arith.constant 0 : index
    %c0_14 = arith.constant 0 : index
    %53 = vector.load %arg2[%c0_13, %c0_14] : memref<8x2xf32, #tpu.memory_space<vmem>>, vector<8x2xf32>
    tpu.vector_store %arg2[%c0_13, %c0_14], %52 {strides = array<i32>} : memref<8x2xf32, #tpu.memory_space<vmem>>, vector<8x2xf32>,
    return
  }
}

</mosaic_0001>

<llo_original>
// kernel: tpu_custom_call.1
$region0: #{tpu_custom_call.1}
  #allocation0 [shape = 'u32[]', space=smem, size = 0x4, offset = 0x4, fixed_abs, tag = 'smem constant byte address 0x4 - core index']
  #allocation1 [shape = 'u32[144,128]{1,0:T(1,128)}', space=vmem, size = 0x12000, scoped, tag = 'internal scratch']
  %s0 = inlined_call_operand.vmem [shape: f32[8,4], index: 0, kind: input, shape index: {}]
  %s1 = inlined_call_operand.hbm [shape: f32[288,128], index: 1, kind: input, shape index: {}]
  %s2 = inlined_call_operand.vmem [shape: f32[8,2], index: 2, kind: output, shape index: {}]
  %s3 = sld [smem:[#allocation0]]
  $region22: #{tpu_custom_call.1} parent=0
    _
  %s5 = ssub.s32 1, %s3
  %s6 = scalar_select 0, %s5, %s3
  $region1: #{tpu_custom_call.1} parent=0
    #allocation2 [shape = 'u8[147456]{0}', space=vmem, size = 0x24000, scoped, tag = 'input window, operand 1, single buffered']
    #allocation3 [shape = 's32[1]{0}', space=sflag, size = 0x4, scoped, tag = 'scoped memory for tpu_custom_call.1']
    %7 = vsyncpa [#allocation3], 0
    // Predicated region
    $region2: #{tpu_custom_call.1} parent=1 // pred_check
      _
    $region3: #{tpu_custom_call.1} parent=1 // pred_check_branch
      %9 = sbr.rel (0) target = $region5
    $region4: #{tpu_custom_call.1} parent=1 // pred_region
      _
    $region5: #{tpu_custom_call.1} parent=1 // pred_fallthru
      _
    // Predicated region
    $region6: #{tpu_custom_call.1} parent=1 // pred_check
      _
    $region7: #{tpu_custom_call.1} parent=1 // pred_check_branch
      %11 = sbr.rel (0) target = $region9
    $region8: #{tpu_custom_call.1} parent=1 // pred_region
      %s13 = ssub.s32 4608, 4608
      %14 = vsyncadd [#allocation3], %s13
      %s15 = sshll.u32 [#allocation2], 4
      %s16 = int_to_ptr.vmem [resolvable:$true] %s15
      %21 = dma.hbm_to_vmem [thread:$0]  %s1, 4608, %s16, [#allocation3], 128, 128, 8
    $region9: #{tpu_custom_call.1} parent=1 // pred_fallthru
      _
    // Predicated region
    $region10: #{tpu_custom_call.1} parent=1 // pred_check
      _
    $region11: #{tpu_custom_call.1} parent=1 // pred_check_branch
      %23 = sbr.rel (0) target = $region13
    $region12: #{tpu_custom_call.1} parent=1 // pred_region
      %24 = dma.done [#allocation3], 4608
    $region13: #{tpu_custom_call.1} parent=1 // pred_fallthru
      _
    %v25 = vld [vmem:[%s0] sm:$0xff]
    %v26 = vld [vmem:[#allocation2] sm:$0xff]
    %v27 = vld [vmem:[#allocation2 + $0x8] sm:$0x1]
    %29 = vset.pattern.permute.xlu0 0
    %30 = vperm.xlu0 %29, %v25
    %v31 = vpop.permute.xlu0 %30
    %v33 = vlaneseq
    %v34 = vshrl.u32 %v33, 7
    %v35 = vsub.s32 0, %v34
    %v36 = vrot.slane %v26, %v35
    %v37 = vmul.f32 %v31, %v36
    %v38 = vlaneseq
    %v39 = vshrl.u32 %v38, 7
    %v40 = vsub.s32 0, %v39
    %v41 = vrot.slane %v27, %v40
    %v42 = vadd.f32 %v41, %v37
    %43 = vset.pattern.permute.xlu0 1
    %44 = vperm.xlu0 %43, %v25
    %v45 = vpop.permute.xlu0 %44
    %v47 = vlaneseq
    %v48 = vshrl.u32 %v47, 7
    %v49 = vsub.s32 1, %v48
    %v50 = vrot.slane %v26, %v49
    %v51 = vmul.f32 %v45, %v50
    %v52 = vadd.f32 %v42, %v51
    %53 = vset.pattern.permute.xlu0 2
    %54 = vperm.xlu0 %53, %v25
    %v55 = vpop.permute.xlu0 %54
    %v57 = vlaneseq
    %v58 = vshrl.u32 %v57, 7
    %v59 = vsub.s32 2, %v58
    %v60 = vrot.slane %v26, %v59
    %v61 = vmul.f32 %v55, %v60
    %v62 = vadd.f32 %v52, %v61
    %63 = vset.pattern.permute.xlu0 3
    %64 = vperm.xlu0 %63, %v25
    %v65 = vpop.permute.xlu0 %64
    %v67 = vlaneseq
    %v68 = vshrl.u32 %v67, 7
    %v69 = vsub.s32 3, %v68
    %v70 = vrot.slane %v26, %v69
    %v71 = vmul.f32 %v65, %v70
    %v72 = vadd.f32 %v62, %v71
    %v73 = vmax.f32 %v72, 0.0
    %v74 = vld [vmem:[#allocation2 + $0x10] sm:$0xff]
    %v75 = vld [vmem:[#allocation2 + $0x18] sm:$0xff]
    %v76 = vld [vmem:[#allocation2 + $0x20] sm:$0xff]
    %v77 = vld [vmem:[#allocation2 + $0x28] sm:$0xff]
    %v78 = vld [vmem:[#allocation2 + $0x30] sm:$0xff]
    %v79 = vld [vmem:[#allocation2 + $0x38] sm:$0xff]
    %v80 = vld [vmem:[#allocation2 + $0x40] sm:$0xff]
    %v81 = vld [vmem:[#allocation2 + $0x48] sm:$0xff]
    %v82 = vld [vmem:[#allocation2 + $0x50] sm:$0xff]
    %v83 = vld [vmem:[#allocation2 + $0x58] sm:$0xff]
    %v84 = vld [vmem:[#allocation2 + $0x60] sm:$0xff]
    %v85 = vld [vmem:[#allocation2 + $0x68] sm:$0xff]
    %v86 = vld [vmem:[#allocation2 + $0x70] sm:$0xff]
    %v87 = vld [vmem:[#allocation2 + $0x78] sm:$0xff]
    %v88 = vld [vmem:[#allocation2 + $0x80] sm:$0xff]
    %v89 = vld [vmem:[#allocation2 + $0x88] sm:$0xff]
    %v90 = vld [vmem:[#allocation2 + $0x90] sm:$0x1]
    %v91 = vlaneseq
    %v92 = vshrl.u32 %v91, 7
    %v93 = vsub.s32 0, %v92
    %v94 = vrot.slane %v90, %v93
    %95 = vmatprep.subr.mxu0 0.0
    %96 = vmatpush1.msra.mxu0 %v89
    %97 = vmatprep.subr.mxu0 0.0
    %98 = vmatpush1.msra.mxu0 %v88
    %99 = vmatprep.subr.mxu0 0.0
    %100 = vmatpush1.msra.mxu0 %v87
    %101 = vmatprep.subr.mxu0 0.0
    %102 = vmatpush1.msra.mxu0 %v86
    %103 = vmatprep.subr.mxu0 0.0
    %104 = vmatpush1.msra.mxu0 %v85
    %105 = vmatprep.subr.mxu0 0.0
    %106 = vmatpush1.msra.mxu0 %v84
    %107 = vmatprep.subr.mxu0 0.0
    %108 = vmatpush1.msra.mxu0 %v83
    %109 = vmatprep.subr.mxu0 0.0
    %110 = vmatpush1.msra.mxu0 %v82
    %111 = vmatprep.subr.mxu0 0.0
    %112 = vmatpush1.msra.mxu0 %v81
    %113 = vmatprep.subr.mxu0 0.0
    %114 = vmatpush1.msra.mxu0 %v80
    %115 = vmatprep.subr.mxu0 0.0
    %116 = vmatpush1.msra.mxu0 %v79
    %117 = vmatprep.subr.mxu0 0.0
    %118 = vmatpush1.msra.mxu0 %v78
    %119 = vmatprep.subr.mxu0 0.0
    %120 = vmatpush1.msra.mxu0 %v77
    %121 = vmatprep.subr.mxu0 0.0
    %122 = vmatpush1.msra.mxu0 %v76
    %123 = vmatprep.subr.mxu0 0.0
    %124 = vmatpush1.msra.mxu0 %v75
    %125 = vmatprep.subr.mxu0 0.0
    %126 = vmatpush1.msra.mxu0 %v74
    %127 = vmatprep.subr.mxu0 0.0
    %128 = vmatpush2.msra.mxu0 0.0
    %129 = vmatprep.subr.mxu0 0.0
    %130 = vmatpush2.msra.mxu0 0.0
    %131 = vmatprep.subr.mxu0 0.0
    %132 = vmatpush2.msra.mxu0 0.0
    %133 = vmatprep.subr.mxu0 0.0
    %134 = vmatpush2.msra.mxu0 0.0
    %135 = vmatprep.subr.mxu0 0.0
    %136 = vmatpush2.msra.mxu0 0.0
    %137 = vmatprep.subr.mxu0 0.0
    %138 = vmatpush2.msra.mxu0 0.0
    %139 = vmatprep.subr.mxu0 0.0
    %140 = vmatpush2.msra.mxu0 0.0
    %141 = vmatprep.subr.mxu0 0.0
    %142 = vmatpush2.msra.mxu0 0.0
    %143 = vmatprep.subr.mxu0 0.0
    %144 = vmatpush2.msra.mxu0 0.0
    %145 = vmatprep.subr.mxu0 0.0
    %146 = vmatpush2.msra.mxu0 0.0
    %147 = vmatprep.subr.mxu0 0.0
    %148 = vmatpush2.msra.mxu0 0.0
    %149 = vmatprep.subr.mxu0 0.0
    %150 = vmatpush2.msra.mxu0 0.0
    %151 = vmatprep.subr.mxu0 0.0
    %152 = vmatpush2.msra.mxu0 0.0
    %153 = vmatprep.subr.mxu0 0.0
    %154 = vmatpush2.msra.mxu0 0.0
    %155 = vmatprep.subr.mxu0 0.0
    %156 = vmatpush2.msra.mxu0 0.0
    %157 = vmatprep.subr.mxu0 0.0
    %158 = vmatpush2.msra.mxu0 0.0
    %159 = vmatprep.mubr.f32.mxu0 0.0
    %160 = vmatmul.mubr.f32.gmra.mxu0 %v73
    %v161 = vpop.f32.mrf.mxu0
    %v162 = vadd.f32 %v94, %v161
    %v163 = vpop.f32.mrf.mxu0
    %164 = vdwg.mxu0
    %v165 = vmax.f32 %v162, 0.0
    %v166 = vld [vmem:[#allocation2 + $0xa0] sm:$0xff]
    %v167 = vld [vmem:[#allocation2 + $0xa8] sm:$0xff]
    %v168 = vld [vmem:[#allocation2 + $0xb0] sm:$0xff]
    %v169 = vld [vmem:[#allocation2 + $0xb8] sm:$0xff]
    %v170 = vld [vmem:[#allocation2 + $0xc0] sm:$0xff]
    %v171 = vld [vmem:[#allocation2 + $0xc8] sm:$0xff]
    %v172 = vld [vmem:[#allocation2 + $0xd0] sm:$0xff]
    %v173 = vld [vmem:[#allocation2 + $0xd8] sm:$0xff]
    %v174 = vld [vmem:[#allocation2 + $0xe0] sm:$0xff]
    %v175 = vld [vmem:[#allocation2 + $0xe8] sm:$0xff]
    %v176 = vld [vmem:[#allocation2 + $0xf0] sm:$0xff]
    %v177 = vld [vmem:[#allocation2 + $0xf8] sm:$0xff]
    %v178 = vld [vmem:[#allocation2 + $0x100] sm:$0xff]
    %v179 = vld [vmem:[#allocation2 + $0x108] sm:$0xff]
    %v180 = vld [vmem:[#allocation2 + $0x110] sm:$0xff]
    %v181 = vld [vmem:[#allocation2 + $0x118] sm:$0xff]
    %v182 = vld [vmem:[#allocation2 + $0x98] sm:$0x1]
    %v183 = vlaneseq
    %v184 = vshrl.u32 %v183, 7
    %v185 = vsub.s32 0, %v184
    %v186 = vrot.slane %v182, %v185
    %187 = vmatprep.subr.mxu0 0.0
    %188 = vmatpush1.msra.mxu0 %v181
    %189 = vmatprep.subr.mxu0 0.0
    %190 = vmatpush1.msra.mxu0 %v180
    %191 = vmatprep.subr.mxu0 0.0
    %192 = vmatpush1.msra.mxu0 %v179
    %193 = vmatprep.subr.mxu0 0.0
    %194 = vmatpush1.msra.mxu0 %v178
    %195 = vmatprep.subr.mxu0 0.0
    %196 = vmatpush1.msra.mxu0 %v177
    %197 = vmatprep.subr.mxu0 0.0
    %198 = vmatpush1.msra.mxu0 %v176
    %199 = vmatprep.subr.mxu0 0.0
    %200 = vmatpush1.msra.mxu0 %v175
    %201 = vmatprep.subr.mxu0 0.0
    %202 = vmatpush1.msra.mxu0 %v174
    %203 = vmatprep.subr.mxu0 0.0
    %204 = vmatpush1.msra.mxu0 %v173
    %205 = vmatprep.subr.mxu0 0.0
    %206 = vmatpush1.msra.mxu0 %v172
    %207 = vmatprep.subr.mxu0 0.0
    %208 = vmatpush1.msra.mxu0 %v171
    %209 = vmatprep.subr.mxu0 0.0
    %210 = vmatpush1.msra.mxu0 %v170
    %211 = vmatprep.subr.mxu0 0.0
    %212 = vmatpush1.msra.mxu0 %v169
    %213 = vmatprep.subr.mxu0 0.0
    %214 = vmatpush1.msra.mxu0 %v168
    %215 = vmatprep.subr.mxu0 0.0
    %216 = vmatpush1.msra.mxu0 %v167
    %217 = vmatprep.subr.mxu0 0.0
    %218 = vmatpush1.msra.mxu0 %v166
    %219 = vmatprep.subr.mxu0 0.0
    %220 = vmatpush2.msra.mxu0 0.0
    %221 = vmatprep.subr.mxu0 0.0
    %222 = vmatpush2.msra.mxu0 0.0
    %223 = vmatprep.subr.mxu0 0.0
    %224 = vmatpush2.msra.mxu0 0.0
    %225 = vmatprep.subr.mxu0 0.0
    %226 = vmatpush2.msra.mxu0 0.0
    %227 = vmatprep.subr.mxu0 0.0
    %228 = vmatpush2.msra.mxu0 0.0
    %229 = vmatprep.subr.mxu0 0.0
    %230 = vmatpush2.msra.mxu0 0.0
    %231 = vmatprep.subr.mxu0 0.0
    %232 = vmatpush2.msra.mxu0 0.0
    %233 = vmatprep.subr.mxu0 0.0
    %234 = vmatpush2.msra.mxu0 0.0
    %235 = vmatprep.subr.mxu0 0.0
    %236 = vmatpush2.msra.mxu0 0.0
    %237 = vmatprep.subr.mxu0 0.0
    %238 = vmatpush2.msra.mxu0 0.0
    %239 = vmatprep.subr.mxu0 0.0
    %240 = vmatpush2.msra.mxu0 0.0
    %241 = vmatprep.subr.mxu0 0.0
    %242 = vmatpush2.msra.mxu0 0.0
    %243 = vmatprep.subr.mxu0 0.0
    %244 = vmatpush2.msra.mxu0 0.0
    %245 = vmatprep.subr.mxu0 0.0
    %246 = vmatpush2.msra.mxu0 0.0
    %247 = vmatprep.subr.mxu0 0.0
    %248 = vmatpush2.msra.mxu0 0.0
    %249 = vmatprep.subr.mxu0 0.0
    %250 = vmatpush2.msra.mxu0 0.0
    %251 = vmatprep.mubr.f32.mxu0 0.0
    %252 = vmatmul.mubr.f32.gmra.mxu0 %v165
    %v253 = vpop.f32.mrf.mxu0
    %v254 = vadd.f32 %v186, %v253
    %v255 = vpop.f32.mrf.mxu0
    %256 = vdwg.mxu0
    %vm257 = vcmask 15360
    %v258 = vsel %vm257, %v254, 0.0
    %259 = vadd.xlane.f32.xlu0 %v258
    %v260 = vpop.xlane.xlu0 %259
    %v261 = vrot.slane %v260, 4
    %v262 = vadd.f32 %v260, %v261
    %v263 = vrot.slane %v262, 2
    %v264 = vadd.f32 %v262, %v263
    %v265 = vrot.slane %v264, 1
    %v266 = vadd.f32 %v264, %v265
    %s267 = vtos %v266
    %v268 = vrcp.pop 16.0
    %s269 = vtos %v268
    %s270 = smul.f32 %s267, %s269
    %272 = vset.pattern.permute.xlu0 2
    %273 = vperm.xlu0 %272, %v254
    %v274 = vpop.permute.xlu0 %273
    %v276 = vadd.f32 %v274, %v254
    %v277 = vstv %s270
    %v278 = vsub.f32 %v276, %v277
    %279 = vst.msk [vmem:[%s2] sm:$0xff] %vm257, %v278
    // Predicated region
    $region14: #{tpu_custom_call.1} parent=1 // pred_check
      _
    $region15: #{tpu_custom_call.1} parent=1 // pred_check_branch
      %281 = sbr.rel (0) target = $region17
    $region16: #{tpu_custom_call.1} parent=1 // pred_region
      _
    $region17: #{tpu_custom_call.1} parent=1 // pred_fallthru
      _
    // Predicated region
    $region18: #{tpu_custom_call.1} parent=1 // pred_check
      _
    $region19: #{tpu_custom_call.1} parent=1 // pred_check_branch
      %283 = sbr.rel (0) target = $region21
    $region20: #{tpu_custom_call.1} parent=1 // pred_region
      _
    $region21: #{tpu_custom_call.1} parent=1 // pred_fallthru
      _
    %284 = vsyncpa [#allocation3], 1

</llo_original>
